<compile_context>
chip_gen: v5e
topology: v5e:2x2
jax: 0.10.0
libtpu: 0.0.40
codegen_flags: <defaults>
</compile_context>

<pallas_src>
import functools
import math

import jax
import jax.numpy as jnp
from jax.experimental import pallas as pl
from jax.experimental.pallas import tpu as pltpu


VMEM_LIMIT_BYTES = 48 * 1024 * 1024   # explicit scoped limit; leaves headroom on v7x (64 MiB)
VMEM_BUDGET_BYTES = 40 * 1024 * 1024  # target working set for the weight-resident dense kernels


def _largest_divisor_tile(M, target):
    t = (target // 8) * 8
    while t >= 8:
        if M % t == 0:
            return t
        t -= 8
    return (target // 8) * 8  # edge blocks padded/cropped; only row-wise math runs on them


def _fit_tm(M, K, N, *, target=512, residual=False):
    """Row-tile for the weight-resident dense kernels, shrunk to fit the VMEM budget."""
    tm = M if M <= target else _largest_divisor_tile(M, target)

    def footprint(t):
        b = 2 * K * N * 2          # resident bf16 weight (worst-case double-buffered)
        b += 2 * t * K * 2         # bf16 x stream (double-buffered)
        b += 2 * t * N * 2         # bf16 out stream
        if residual:
            b += 2 * t * N * 2     # bf16 residual stream
        return b + 8 * N * 4       # bias / gamma / beta

    while tm > 8 and footprint(tm) > VMEM_BUDGET_BYTES:
        tm = max(8, ((tm // 2) // 8) * 8 or 8)
    return tm


# ------------------- weight-resident dense (matmul + bias + optional activation) -------------------
def _dense_kernel(x_ref, w_ref, b_ref, o_ref, *, activation):
    y = jnp.dot(x_ref[...], w_ref[...], preferred_element_type=jnp.float32) + b_ref[...]
    if activation == "gelu":
        # TODO(synk): HF BERT/LaBSE uses erf-based GELU; tanh approximation kept for robust
        # Mosaic lowering (~1e-3-level deviation).
        c = 0.7978845608028654  # sqrt(2/pi)
        y = 0.5 * y * (1.0 + jnp.tanh(c * (y + 0.044715 * y * y * y)))
    elif activation == "tanh":
        y = jnp.tanh(y)
    o_ref[...] = y.astype(o_ref.dtype)


def dense(x, w, b, activation=None, *, tm=512, out_dtype=jnp.bfloat16):
    M, K = x.shape
    _, N = w.shape
    tm = _fit_tm(M, K, N, target=tm, residual=False)
    return pl.pallas_call(
        functools.partial(_dense_kernel, activation=activation),
        grid=(pl.cdiv(M, tm),),
        in_specs=[
            pl.BlockSpec((tm, K), lambda i: (i, 0)),
            pl.BlockSpec((K, N), lambda i: (0, 0)),   # resident weight: DMA'd once
            pl.BlockSpec((1, N), lambda i: (0, 0)),
        ],
        out_specs=pl.BlockSpec((tm, N), lambda i: (i, 0)),
        out_shape=jax.ShapeDtypeStruct((M, N), out_dtype),
        compiler_params=pltpu.CompilerParams(
            dimension_semantics=("parallel",),
            vmem_limit_bytes=VMEM_LIMIT_BYTES,
        ),
    )(x, w, b.reshape(1, N))


# ------------------- weight-resident dense + residual add + LayerNorm (fused epilogue) -------------------
def _dense_add_ln_kernel(x_ref, w_ref, b_ref, r_ref, g_ref, beta_ref, o_ref, *, eps):
    y = (jnp.dot(x_ref[...], w_ref[...], preferred_element_type=jnp.float32)
         + b_ref[...] + r_ref[...].astype(jnp.float32))
    mean = jnp.mean(y, axis=-1, keepdims=True)
    yc = y - mean
    var = jnp.mean(yc * yc, axis=-1, keepdims=True)
    o_ref[...] = (yc * jax.lax.rsqrt(var + eps) * g_ref[...] + beta_ref[...]).astype(o_ref.dtype)


def dense_add_ln(x, w, b, res, gamma, beta, eps=1e-12, *, tm=512, out_dtype=jnp.bfloat16):
    M, K = x.shape
    _, N = w.shape  # LayerNorm reduces over the full feature dim, so the out block spans N
    tm = _fit_tm(M, K, N, target=tm, residual=True)
    return pl.pallas_call(
        functools.partial(_dense_add_ln_kernel, eps=eps),
        grid=(pl.cdiv(M, tm),),
        in_specs=[
            pl.BlockSpec((tm, K), lambda i: (i, 0)),
            pl.BlockSpec((K, N), lambda i: (0, 0)),
            pl.BlockSpec((1, N), lambda i: (0, 0)),
            pl.BlockSpec((tm, N), lambda i: (i, 0)),
            pl.BlockSpec((1, N), lambda i: (0, 0)),
            pl.BlockSpec((1, N), lambda i: (0, 0)),
        ],
        out_specs=pl.BlockSpec((tm, N), lambda i: (i, 0)),
        out_shape=jax.ShapeDtypeStruct((M, N), out_dtype),
        compiler_params=pltpu.CompilerParams(
            dimension_semantics=("parallel",),
            vmem_limit_bytes=VMEM_LIMIT_BYTES,
        ),
    )(x, w, b.reshape(1, N), res, gamma.reshape(1, N), beta.reshape(1, N))


# ------------------- plain LayerNorm (embeddings; no residual stream) -------------------
def _layernorm_kernel(x_ref, g_ref, b_ref, o_ref, *, eps):
    x = x_ref[...].astype(jnp.float32)
    mean = jnp.mean(x, axis=-1, keepdims=True)
    xc = x - mean
    var = jnp.mean(xc * xc, axis=-1, keepdims=True)
    o_ref[...] = (xc * jax.lax.rsqrt(var + eps) * g_ref[...] + b_ref[...]).astype(o_ref.dtype)


def layernorm(x, gamma, beta, eps=1e-12, *, tm=512, out_dtype=jnp.bfloat16):
    M, H = x.shape
    tm = M if M <= tm else _largest_divisor_tile(M, tm)
    return pl.pallas_call(
        functools.partial(_layernorm_kernel, eps=eps),
        grid=(pl.cdiv(M, tm),),
        in_specs=[
            pl.BlockSpec((tm, H), lambda i: (i, 0)),
            pl.BlockSpec((1, H), lambda i: (0, 0)),
            pl.BlockSpec((1, H), lambda i: (0, 0)),
        ],
        out_specs=pl.BlockSpec((tm, H), lambda i: (i, 0)),
        out_shape=jax.ShapeDtypeStruct((M, H), out_dtype),
        compiler_params=pltpu.CompilerParams(
            dimension_semantics=("parallel",),
            vmem_limit_bytes=VMEM_LIMIT_BYTES,
        ),
    )(x, gamma.reshape(1, H), beta.reshape(1, H))


# ------------------- multi-head self-attention (per-batch block, head PAIRS, direct stores) -------------------
def _attention_kernel(qkv_ref, bias_ref, o_ref, *, num_heads, head_dim, hidden, heads_per_group):
    scale = 1.0 / math.sqrt(head_dim)
    bias = bias_ref[0]                      # [1, S] additive key mask (f32), broadcast over rows
    dH = head_dim
    gw = heads_per_group * dH               # group width: 128 lanes at LaBSE scale (2 x 64)
    for g in range(num_heads // heads_per_group):   # static; each iter ends with a store (small live set)
        q_g = qkv_ref[0, :, g * gw:(g + 1) * gw]                                      # [S, gw] bf16
        k_g = qkv_ref[0, :, hidden + g * gw:hidden + (g + 1) * gw]                    # [S, gw]
        v_g = qkv_ref[0, :, 2 * hidden + g * gw:2 * hidden + (g + 1) * gw]            # [S, gw]
        parts = []
        for j in range(heads_per_group):
            q = q_g[:, j * dH:(j + 1) * dH]
            k = k_g[:, j * dH:(j + 1) * dH]
            v = v_g[:, j * dH:(j + 1) * dH]
            s = jax.lax.dot_general(q, k, (((1,), (1,)), ((), ())),
                                    preferred_element_type=jnp.float32) * scale       # [S, S] f32
            s = s + bias
            m = jnp.max(s, axis=-1, keepdims=True)
            p = jnp.exp(s - m)
            denom = jnp.sum(p, axis=-1, keepdims=True)
            p = (p * pl.reciprocal(denom, approx=True)).astype(v.dtype)               # bf16 probs
            parts.append(jax.lax.dot_general(p, v, (((1,), (0,)), ((), ())),
                                             preferred_element_type=jnp.float32))     # [S, dH] f32
        # One lane-dense store per head pair (no whole-row concatenate, no big live set).
        o_ref[0, :, g * gw:(g + 1) * gw] = jnp.concatenate(parts, axis=-1).astype(o_ref.dtype)


def attention(qkv, mask_bias, num_heads):
    B, S, three_h = qkv.shape
    H = three_h // 3
    head_dim = H // num_heads
    heads_per_group = 2 if num_heads % 2 == 0 else 1
    return pl.pallas_call(
        functools.partial(_attention_kernel, num_heads=num_heads, head_dim=head_dim,
                          hidden=H, heads_per_group=heads_per_group),
        grid=(B,),
        in_specs=[
            pl.BlockSpec((1, S, three_h), lambda b: (b, 0, 0)),
            pl.BlockSpec((1, 1, S), lambda b: (b, 0, 0)),
        ],
        out_specs=pl.BlockSpec((1, S, H), lambda b: (b, 0, 0)),
        out_shape=jax.ShapeDtypeStruct((B, S, H), jnp.bfloat16),
        compiler_params=pltpu.CompilerParams(
            dimension_semantics=("parallel",),
            vmem_limit_bytes=VMEM_LIMIT_BYTES,
        ),
    )(qkv, mask_bias)


# ------------------- fused pooler (tanh) + classifier (128-lane padded output) -------------------
def _pool_cls_kernel(x_ref, pw_ref, pb_ref, cw_ref, cb_ref, o_ref):
    pooled = jnp.tanh(
        jnp.dot(x_ref[...], pw_ref[...], preferred_element_type=jnp.float32) + pb_ref[...]
    )
    # nn.Dropout(0.1)(pooled) -> identity at inference
    o_ref[...] = (jnp.dot(pooled.astype(cw_ref.dtype), cw_ref[...],
                          preferred_element_type=jnp.float32) + cb_ref[...])


def pooler_classifier(cls, pool_w, pool_b, cls_w, cls_b):
    B, H = cls.shape
    num_labels = cls_w.shape[1]
    n_pad = max(128, ((num_labels + 127) // 128) * 128)   # lane-dense classifier store
    cls_w_p = jnp.zeros((H, n_pad), cls_w.dtype).at[:, :num_labels].set(cls_w)
    cls_b_p = jnp.zeros((1, n_pad), jnp.float32).at[0, :num_labels].set(cls_b)
    out = pl.pallas_call(
        _pool_cls_kernel,
        grid=(1,),
        in_specs=[
            pl.BlockSpec((B, H), lambda i: (0, 0)),
            pl.BlockSpec((H, H), lambda i: (0, 0)),
            pl.BlockSpec((1, H), lambda i: (0, 0)),
            pl.BlockSpec((H, n_pad), lambda i: (0, 0)),
            pl.BlockSpec((1, n_pad), lambda i: (0, 0)),
        ],
        out_specs=pl.BlockSpec((B, n_pad), lambda i: (0, 0)),
        out_shape=jax.ShapeDtypeStruct((B, n_pad), jnp.float32),
        compiler_params=pltpu.CompilerParams(
            dimension_semantics=("arbitrary",),
            vmem_limit_bytes=VMEM_LIMIT_BYTES,
        ),
    )(cls, pool_w, pool_b.reshape(1, H), cls_w_p, cls_b_p)
    return out[:, :num_labels]


# ------------------- BERT-style forward (scaled-down LaBSE) -------------------
def bert_forward(params, input_ids, attention_mask, *, num_layers, num_heads):
    B, S = input_ids.shape
    H = params["word_emb"].shape[1]

    # embeddings (gather stays plain-JAX glue); token_type_ids assumed all-zero
    x = (
        params["word_emb"][input_ids]
        + params["pos_emb"][:S][None, :, :]
        + params["type_emb"][0][None, None, :]
    )
    x2 = layernorm(x.reshape(B * S, H), params["emb_ln_g"], params["emb_ln_b"])   # bf16 [B*S, H]
    # embedding dropout -> identity at inference

    # rank-1 additive mask bias [B, 1, S]; never broadcast to [B, nH, S, S]
    mask_bias = ((1.0 - attention_mask.astype(jnp.float32)) * -1e9)[:, None, :]

    for layer in range(num_layers):
        p = params["layers"][layer]
        qkv = dense(x2, p["qkv_w"], p["qkv_b"])                                    # bf16 [B*S, 3H]
        ctx = attention(qkv.reshape(B, S, 3 * H), mask_bias, num_heads)            # bf16 [B, S, H]
        x2 = dense_add_ln(ctx.reshape(B * S, H), p["ao_w"], p["ao_b"],
                          x2, p["ln1_g"], p["ln1_b"])
        ffn = dense(x2, p["fi_w"], p["fi_b"], activation="gelu")
        x2 = dense_add_ln(ffn, p["fo_w"], p["fo_b"], x2, p["ln2_g"], p["ln2_b"])

    cls = x2.reshape(B, S, H)[:, 0, :]                                             # [CLS] rows
    logits = pooler_classifier(cls, params["pool_w"], params["pool_b"],
                               params["cls_w"], params["cls_b"])
    return logits


# ------------------- deterministic parameter init (matmul weights stored bf16) -------------------
def init_params(key, *, vocab=100, H=32, I=64, num_layers=2, max_pos=64, num_labels=2):
    counter = [0]

    def nxt():
        counter[0] += 1
        return jax.random.fold_in(key, counter[0])

    def w32(shape):
        return 0.02 * jax.random.normal(nxt(), shape, jnp.float32)

    def wbf(shape):
        return w32(shape).astype(jnp.bfloat16)

    params = dict(
        word_emb=w32((vocab, H)),
        pos_emb=w32((max_pos, H)),
        type_emb=w32((2, H)),
        emb_ln_g=jnp.ones((H,), jnp.float32),
        emb_ln_b=jnp.zeros((H,), jnp.float32),
        pool_w=wbf((H, H)),
        pool_b=jnp.zeros((H,), jnp.float32),
        cls_w=wbf((H, num_labels)),
        cls_b=jnp.zeros((num_labels,), jnp.float32),
        layers=[],
    )
    for _ in range(num_layers):
        q_w, k_w, v_w = wbf((H, H)), wbf((H, H)), wbf((H, H))
        params["layers"].append(
            dict(
                # fused QKV projection: [H, 3H] bf16 weight, [3H] f32 bias
                qkv_w=jnp.concatenate([q_w, k_w, v_w], axis=1),
                qkv_b=jnp.zeros((3 * H,), jnp.float32),
                ao_w=wbf((H, H)), ao_b=jnp.zeros((H,), jnp.float32),
                ln1_g=jnp.ones((H,), jnp.float32), ln1_b=jnp.zeros((H,), jnp.float32),
                fi_w=wbf((H, I)), fi_b=jnp.zeros((I,), jnp.float32),
                fo_w=wbf((I, H)), fo_b=jnp.zeros((H,), jnp.float32),
                ln2_g=jnp.ones((H,), jnp.float32), ln2_b=jnp.zeros((H,), jnp.float32),
            )
        )
    return params


if __name__ == "__main__":
    key = jax.random.PRNGKey(0)
    B, S = 2, 8
    H, I, nH, L = 32, 64, 2, 2   # scaled-down LaBSE: hidden=32 (vs 768), 2 layers, 2 heads

    params = init_params(key, vocab=100, H=H, I=I, num_layers=L, num_labels=2)

    k_ids, _ = jax.random.split(jax.random.fold_in(key, 999))
    input_ids = jax.random.randint(k_ids, (B, S), 0, 100, dtype=jnp.int32)
    attention_mask = jnp.ones((B, S), jnp.int32).at[1, 6:].set(0)  # second example is padded

    logits = bert_forward(params, input_ids, attention_mask, num_layers=L, num_heads=nH)
    logits = jax.block_until_ready(logits)
    assert logits.shape == (B, 2) and logits.dtype == jnp.float32
    print("KERNEL_OK")
</pallas_src>

<mosaic_0001>
module attributes {stable_mosaic.version = 11 : i64} {
  func.func @_layernorm_kernel(%arg0: i32, %arg1: memref<16x32xf32, #tpu.memory_space<vmem>>, %arg2: memref<1x32xf32, #tpu.memory_space<vmem>>, %arg3: memref<1x32xf32, #tpu.memory_space<vmem>>, %arg4: memref<16x32xbf16, #tpu.memory_space<vmem>>) attributes {dimension_semantics = [#tpu.dimension_semantics<parallel>], iteration_bounds = array<i64: 1>, scalar_prefetch = 0 : i64, scratch_operands = 0 : i64, tpu.core_type = #tpu.core_type<tc>, window_params = [{transform_indices = @transform_0, window_bounds = array<i64: 16, 32>}, {pipeline_mode = #tpu.pipeline_mode<synchronous>, transform_indices = @transform_1, window_bounds = array<i64: 1, 32>}, {pipeline_mode = #tpu.pipeline_mode<synchronous>, transform_indices = @transform_2, window_bounds = array<i64: 1, 32>}, {transform_indices = @transform_3, window_bounds = array<i64: 16, 32>}]} {
    %c0 = arith.constant 0 : index
    %c0_0 = arith.constant 0 : index
    %0 = vector.load %arg1[%c0, %c0_0] : memref<16x32xf32, #tpu.memory_space<vmem>>, vector<16x32xf32>
    %cst = arith.constant dense<0.000000e+00> : vector<16xf32>
    %1 = vector.multi_reduction <add>, %0, %cst [1] : vector<16x32xf32> to vector<16xf32>
    %2 = vector.shape_cast %1 : vector<16xf32> to vector<16x1xf32>
    %cst_1 = arith.constant 3.200000e+01 : f32
    %3 = vector.broadcast %cst_1 : f32 to vector<16x1xf32>
    %4 = arith.divf %2, %3 : vector<16x1xf32>
    %5 = vector.broadcast %4 : vector<16x1xf32> to vector<16x32xf32>
    %6 = arith.subf %0, %5 : vector<16x32xf32>
    %7 = arith.mulf %6, %6 : vector<16x32xf32>
    %cst_2 = arith.constant dense<0.000000e+00> : vector<16xf32>
    %8 = vector.multi_reduction <add>, %7, %cst_2 [1] : vector<16x32xf32> to vector<16xf32>
    %9 = vector.shape_cast %8 : vector<16xf32> to vector<16x1xf32>
    %cst_3 = arith.constant 3.200000e+01 : f32
    %10 = vector.broadcast %cst_3 : f32 to vector<16x1xf32>
    %11 = arith.divf %9, %10 : vector<16x1xf32>
    %cst_4 = arith.constant 9.99999996E-13 : f32
    %12 = vector.broadcast %cst_4 : f32 to vector<16x1xf32>
    %13 = arith.addf %11, %12 : vector<16x1xf32>
    %14 = math.rsqrt %13 : vector<16x1xf32>
    %15 = vector.broadcast %14 : vector<16x1xf32> to vector<16x32xf32>
    %16 = arith.mulf %6, %15 : vector<16x32xf32>
    %c0_5 = arith.constant 0 : index
    %c0_6 = arith.constant 0 : index
    %17 = vector.load %arg2[%c0_5, %c0_6] : memref<1x32xf32, #tpu.memory_space<vmem>>, vector<1x32xf32>
    %18 = vector.broadcast %17 : vector<1x32xf32> to vector<16x32xf32>
    %19 = arith.mulf %16, %18 : vector<16x32xf32>
    %c0_7 = arith.constant 0 : index
    %c0_8 = arith.constant 0 : index
    %20 = vector.load %arg3[%c0_7, %c0_8] : memref<1x32xf32, #tpu.memory_space<vmem>>, vector<1x32xf32>
    %21 = vector.broadcast %20 : vector<1x32xf32> to vector<16x32xf32>
    %22 = arith.addf %19, %21 : vector<16x32xf32>
    %23 = arith.truncf %22 : vector<16x32xf32> to vector<16x32xbf16>
    %c0_9 = arith.constant 0 : index
    %c0_10 = arith.constant 0 : index
    %24 = vector.load %arg4[%c0_9, %c0_10] : memref<16x32xbf16, #tpu.memory_space<vmem>>, vector<16x32xbf16>
    tpu.vector_store %arg4[%c0_9, %c0_10], %23 {strides = array<i32>} : memref<16x32xbf16, #tpu.memory_space<vmem>>, vector<16x32xbf16>,
    return
  }
  func.func @transform_0(%arg0: i32) -> (i32, i32) {
    %c0_i32 = arith.constant 0 : i32
    %c0_i32_0 = arith.constant 0 : i32
    return %arg0, %c0_i32 : i32, i32
  }
  func.func @transform_1(%arg0: i32) -> (i32, i32) {
    %c0_i32 = arith.constant 0 : i32
    %c0_i32_0 = arith.constant 0 : i32
    %c0_i32_1 = arith.constant 0 : i32
    return %c0_i32, %c0_i32_0 : i32, i32
  }
  func.func @transform_2(%arg0: i32) -> (i32, i32) {
    %c0_i32 = arith.constant 0 : i32
    %c0_i32_0 = arith.constant 0 : i32
    %c0_i32_1 = arith.constant 0 : i32
    return %c0_i32, %c0_i32_0 : i32, i32
  }
  func.func @transform_3(%arg0: i32) -> (i32, i32) {
    %c0_i32 = arith.constant 0 : i32
    %c0_i32_0 = arith.constant 0 : i32
    return %arg0, %c0_i32 : i32, i32
  }
}

</mosaic_0001>

<llo_original>
// kernel: tpu_custom_call.1
$region0: #{tpu_custom_call.1}
  #allocation0 [shape = 'u32[]', space=smem, size = 0x4, offset = 0x4, fixed_abs, tag = 'smem constant byte address 0x4 - core index']
  #allocation1 [shape = 'u32[72,128]{1,0:T(1,128)}', space=vmem, size = 0x9000, scoped, tag = 'internal scratch']
  %s0 = inlined_call_operand.hbm [shape: f32[16,32], index: 0, kind: input, shape index: {}]
  %s1 = inlined_call_operand.hbm [shape: f32[1,32], index: 1, kind: input, shape index: {}]
  %s2 = inlined_call_operand.vmem [shape: f32[1,32], index: 2, kind: input, shape index: {}]
  %s3 = inlined_call_operand.hbm [shape: bf16[16,32], index: 3, kind: output, shape index: {}]
  %s4 = sld [smem:[#allocation0]]
  $region30: #{tpu_custom_call.1} parent=0
    _
  %s6 = ssub.s32 1, %s4
  %s7 = scalar_select 0, %s6, %s4
  $region1: #{tpu_custom_call.1} parent=0
    #allocation2 [shape = 'u8[8192]{0}', space=vmem, size = 0x2000, scoped, tag = 'input window, operand 0, single buffered']
    #allocation3 [shape = 's32[1]{0}', space=sflag, size = 0x4, scoped, tag = 'scoped memory for tpu_custom_call.1']
    #allocation4 [shape = 's32[1]{0}', space=sflag, size = 0x4, scoped, tag = 'scoped memory for tpu_custom_call.1']
    #allocation5 [shape = 'u8[512]{0}', space=vmem, size = 0x400, scoped, tag = 'input window, operand 1, single buffered']
    #allocation6 [shape = 's32[1]{0}', space=sflag, size = 0x4, scoped, tag = 'scoped memory for tpu_custom_call.1']
    #allocation7 [shape = 'u8[4096]{0}', space=vmem, size = 0x1000, scoped, tag = 'output window, operand 0, single buffered']
    %8 = vsyncpa [#allocation3], 0
    %9 = vsyncpa [#allocation6], 0
    %10 = vsyncpa [#allocation4], 0
    // Predicated region
    $region2: #{tpu_custom_call.1} parent=1 // pred_check
      _
    $region3: #{tpu_custom_call.1} parent=1 // pred_check_branch
      %12 = sbr.rel (0) target = $region5
    $region4: #{tpu_custom_call.1} parent=1 // pred_region
      %14 = vsyncadd [#allocation3], 0
      %s15 = sshll.u32 %s0, 4
      %s16 = int_to_ptr.hbm [resolvable:$true] %s15
      %s17 = sshll.u32 [#allocation2], 4
      %s18 = int_to_ptr.vmem [resolvable:$true] %s17
      %23 = dma.hbm_to_vmem [thread:$0]  %s16, 256, %s18, [#allocation3], 128, 128, 8
    $region5: #{tpu_custom_call.1} parent=1 // pred_fallthru
      _
    // Predicated region
    $region6: #{tpu_custom_call.1} parent=1 // pred_check
      _
    $region7: #{tpu_custom_call.1} parent=1 // pred_check_branch
      %25 = sbr.rel (0) target = $region9
    $region8: #{tpu_custom_call.1} parent=1 // pred_region
      %27 = vsyncadd [#allocation6], 0
      %s29 = sshll.u32 %s1, 4
      %s30 = int_to_ptr.hbm [resolvable:$true] %s29
      %s31 = sshll.u32 [#allocation5], 4
      %s32 = int_to_ptr.vmem [resolvable:$true] %s31
      %34 = dma.hbm_to_vmem [thread:$0]  %s30, 16, %s32, [#allocation6]
    $region9: #{tpu_custom_call.1} parent=1 // pred_fallthru
      _
    // Predicated region
    $region10: #{tpu_custom_call.1} parent=1 // pred_check
      _
    $region11: #{tpu_custom_call.1} parent=1 // pred_check_branch
      %36 = sbr.rel (0) target = $region13
    $region12: #{tpu_custom_call.1} parent=1 // pred_region
      _
    $region13: #{tpu_custom_call.1} parent=1 // pred_fallthru
      _
    // Predicated region
    $region14: #{tpu_custom_call.1} parent=1 // pred_check
      _
    $region15: #{tpu_custom_call.1} parent=1 // pred_check_branch
      %38 = sbr.rel (0) target = $region17
    $region16: #{tpu_custom_call.1} parent=1 // pred_region
      %40 = dma.done [#allocation3], 256
    $region17: #{tpu_custom_call.1} parent=1 // pred_fallthru
      _
    // Predicated region
    $region18: #{tpu_custom_call.1} parent=1 // pred_check
      _
    $region19: #{tpu_custom_call.1} parent=1 // pred_check_branch
      %42 = sbr.rel (0) target = $region21
    $region20: #{tpu_custom_call.1} parent=1 // pred_region
      %44 = dma.done [#allocation6], 16
    $region21: #{tpu_custom_call.1} parent=1 // pred_fallthru
      _
    %v45 = vld [vmem:[#allocation2] sm:$0xff]
    %v46 = vld [vmem:[#allocation2 + $0x8] sm:$0xff]
    %vm47 = vcmask 261120
    %v48 = vsel %vm47, %v45, 0.0
    %49 = vadd.xlane.f32.xlu0 %v48
    %v50 = vpop.xlane.xlu0 %49
    %v51 = vsel %vm47, %v46, 0.0
    %52 = vadd.xlane.f32.xlu0 %v51
    %v53 = vpop.xlane.xlu0 %52
    %v54 = vrcp.pop 32.0
    %v55 = vmul.f32 32.0, %v54
    %v56 = vsub.f32 1.0, %v55
    %v57 = vmul.f32 %v54, %v56
    %v58 = vadd.f32 %v54, %v57
    %vm59 = vweird.f32 %v54
    %v60 = vsel %vm59, %v54, %v58
    %v61 = vmul.f32 %v50, %v60
    %v62 = vmul.f32 %v53, %v60
    %v63 = vsub.f32 %v45, %v61
    %v64 = vsub.f32 %v46, %v62
    %v65 = vmul.f32 %v63, %v63
    %v66 = vmul.f32 %v64, %v64
    %v67 = vsel %vm47, %v65, 0.0
    %68 = vadd.xlane.f32.xlu0 %v67
    %v69 = vpop.xlane.xlu0 %68
    %v70 = vsel %vm47, %v66, 0.0
    %71 = vadd.xlane.f32.xlu0 %v70
    %v72 = vpop.xlane.xlu0 %71
    %v73 = vmul.f32 %v69, %v60
    %v74 = vmul.f32 %v72, %v60
    %v75 = vadd.f32 %v73, 1e-12
    %v76 = vadd.f32 %v74, 1e-12
    %v77 = vrsqrt.pop %v75
    %v78 = vmul.f32 %v77, %v75
    %v79 = vmul.f32 %v78, %v77
    %v80 = vmul.f32 0.5, %v79
    %v81 = vsub.f32 1.5, %v80
    %v82 = vmul.f32 %v77, %v81
    %vm83 = vweird.f32 %v75
    %vm84 = vweird.f32 %v77
    %vm85 = vmor %vm83, %vm84
    %v86 = vsel %vm85, %v77, %v82
    %v87 = vrsqrt.pop %v76
    %v88 = vmul.f32 %v87, %v76
    %v89 = vmul.f32 %v88, %v87
    %v90 = vmul.f32 0.5, %v89
    %v91 = vsub.f32 1.5, %v90
    %v92 = vmul.f32 %v87, %v91
    %vm93 = vweird.f32 %v76
    %vm94 = vweird.f32 %v87
    %vm95 = vmor %vm93, %vm94
    %v96 = vsel %vm95, %v87, %v92
    %v97 = vmul.f32 %v63, %v86
    %v98 = vmul.f32 %v64, %v96
    %v99 = vld [vmem:[#allocation5] sm:$0x1]
    %v101 = vperm.slane %v99, 0
    %v103 = vmul.f32 %v97, %v101
    %v104 = vmul.f32 %v98, %v101
    %v105 = vld [vmem:[%s2] sm:$0x1]
    %v107 = vperm.slane %v105, 0
    %v109 = vadd.f32 %v103, %v107
    %v110 = vadd.f32 %v104, %v107
    %v111 = vpack.c.bf16 %v109, %v109
    %v112 = vpack.c.bf16 %v110, %v110
    %vm113 = vcmask 257024
    %114 = vst.msk [vmem:[#allocation7] sm:$0xf] %vm113, %v111
    %115 = vst.msk [vmem:[#allocation7 + $0x4] sm:$0xf] %vm113, %v112
    // Predicated region
    $region22: #{tpu_custom_call.1} parent=1 // pred_check
      _
    $region23: #{tpu_custom_call.1} parent=1 // pred_check_branch
      %117 = sbr.rel (0) target = $region25
    $region24: #{tpu_custom_call.1} parent=1 // pred_region
      %119 = vsyncadd [#allocation4], 0
      %s120 = sshll.u32 [#allocation7], 4
      %s121 = int_to_ptr.vmem [resolvable:$true] %s120
      %s122 = sshll.u32 %s3, 4
      %s123 = int_to_ptr.hbm [resolvable:$true] %s122
      %128 = dma.vmem_to_hbm [thread:$0]  %s121, 128, %s123, [#allocation4], 64, 64, 4
    $region25: #{tpu_custom_call.1} parent=1 // pred_fallthru
      _
    // Predicated region
    $region26: #{tpu_custom_call.1} parent=1 // pred_check
      _
    $region27: #{tpu_custom_call.1} parent=1 // pred_check_branch
      %130 = sbr.rel (0) target = $region29
    $region28: #{tpu_custom_call.1} parent=1 // pred_region
      %132 = dma.done [#allocation4], 128
    $region29: #{tpu_custom_call.1} parent=1 // pred_fallthru
      _
    %133 = vsyncpa [#allocation3], 1
    %134 = vsyncpa [#allocation6], 1
    %135 = vsyncpa [#allocation4], 1

</llo_original>
